<compile_context>
chip_gen: v7x
topology: tpu7x:2x2x1
jax: 0.10.0
libtpu: 0.0.40
codegen_flags: <defaults>
</compile_context>

<pallas_src>
import functools
import math

import jax
import jax.numpy as jnp
from jax.experimental import pallas as pl
from jax.experimental.pallas import tpu as pltpu


# --------------------------------------------------------------------------
# generic helpers
# --------------------------------------------------------------------------
def _round_up(x, m):
    return (x + m - 1) // m * m


def _row_block(M, cap=512):
    """Row-tile size: up to `cap` rows (HBM-BW-bound kernels peak around
    512-1024 rows), multiple of 8; the tail is padded instead of shrinking."""
    return min(cap, _round_up(M, 8))


def _vmem_limit_bytes():
    try:
        cap = pltpu.get_tpu_info().vmem_capacity_bytes
        return int(min(cap * 3 // 4, 96 * 1024 * 1024))
    except Exception:
        return None


_VMEM_LIMIT = _vmem_limit_bytes()


def _compiler_params(dim_sem):
    kw = dict(dimension_semantics=dim_sem)
    if _VMEM_LIMIT is not None:
        kw["vmem_limit_bytes"] = _VMEM_LIMIT
    return pltpu.CompilerParams(**kw)


# --------------------------------------------------------------------------
# row-tiled matmul(+bias) / layernorm / fused layernorm+QKV kernels
# --------------------------------------------------------------------------
def matmul_bias_kernel(x_ref, w_ref, b_ref, o_ref):
    # operands stay in native dtype (bf16-friendly); accumulate in f32
    acc = jnp.dot(x_ref[...], w_ref[...], preferred_element_type=jnp.float32)
    o_ref[...] = (acc + b_ref[...].astype(jnp.float32)).astype(o_ref.dtype)


def pallas_matmul_bias(x, w, b):
    """x:(M,K) @ w:(K,N) + b:(1,N) -> (M,N); padded row grid, 512-row tiles."""
    M, K = x.shape
    N = w.shape[1]
    bm = _row_block(M)
    Mp = _round_up(M, bm)
    if Mp != M:
        x = jnp.pad(x, ((0, Mp - M), (0, 0)))
    out = pl.pallas_call(
        matmul_bias_kernel,
        grid=(Mp // bm,),
        in_specs=[
            pl.BlockSpec((bm, K), lambda i: (i, 0)),
            pl.BlockSpec((K, N), lambda i: (0, 0)),
            pl.BlockSpec((1, N), lambda i: (0, 0)),
        ],
        out_specs=pl.BlockSpec((bm, N), lambda i: (i, 0)),
        out_shape=jax.ShapeDtypeStruct((Mp, N), x.dtype),
        compiler_params=_compiler_params(("parallel",)),
    )(x, w, b)
    return out[:M]


def layernorm_kernel(x_ref, g_ref, b_ref, o_ref, *, eps):
    x = x_ref[...].astype(jnp.float32)
    mu = jnp.mean(x, axis=-1, keepdims=True)
    var = jnp.mean((x - mu) ** 2, axis=-1, keepdims=True)
    y = (x - mu) * jax.lax.rsqrt(var + eps)
    o_ref[...] = (y * g_ref[...] + b_ref[...]).astype(o_ref.dtype)


def pallas_layernorm(x2d, g, b, eps=1e-5):
    M, C = x2d.shape
    bm = _row_block(M)
    Mp = _round_up(M, bm)
    if Mp != M:
        x2d = jnp.pad(x2d, ((0, Mp - M), (0, 0)))
    out = pl.pallas_call(
        functools.partial(layernorm_kernel, eps=eps),
        grid=(Mp // bm,),
        in_specs=[
            pl.BlockSpec((bm, C), lambda i: (i, 0)),
            pl.BlockSpec((1, C), lambda i: (0, 0)),
            pl.BlockSpec((1, C), lambda i: (0, 0)),
        ],
        out_specs=pl.BlockSpec((bm, C), lambda i: (i, 0)),
        out_shape=jax.ShapeDtypeStruct((Mp, C), x2d.dtype),
        compiler_params=_compiler_params(("parallel",)),
    )(x2d, g.reshape(1, C), b.reshape(1, C))
    return out[:M]


def ln_qkv_kernel(x_ref, g_ref, b_ref, wq_ref, wk_ref, wv_ref,
                  q_ref, k_ref, v_ref, *, eps, scale):
    """Fused LayerNorm + bias-free QKV projection; q is pre-scaled by dh^-0.5.
    Emitting q/k/v separately avoids a later split/transpose HBM pass."""
    f32 = jnp.float32
    x = x_ref[...].astype(f32)
    mu = jnp.mean(x, axis=-1, keepdims=True)
    var = jnp.mean((x - mu) ** 2, axis=-1, keepdims=True)
    xn = (x - mu) * jax.lax.rsqrt(var + eps)
    xn = xn * g_ref[...].astype(f32) + b_ref[...].astype(f32)
    xn = xn.astype(wq_ref.dtype)
    q = jnp.dot(xn, wq_ref[...], preferred_element_type=f32) * scale
    k = jnp.dot(xn, wk_ref[...], preferred_element_type=f32)
    v = jnp.dot(xn, wv_ref[...], preferred_element_type=f32)
    q_ref[...] = q.astype(q_ref.dtype)
    k_ref[...] = k.astype(k_ref.dtype)
    v_ref[...] = v.astype(v_ref.dtype)


def pallas_ln_qkv(x2d, g, b, wq, wk, wv, *, scale, eps=1e-5):
    M, K = x2d.shape
    N = wq.shape[1]
    bm = _row_block(M)
    Mp = _round_up(M, bm)
    if Mp != M:
        x2d = jnp.pad(x2d, ((0, Mp - M), (0, 0)))
    kernel = functools.partial(ln_qkv_kernel, eps=eps, scale=scale)
    row_spec = pl.BlockSpec((bm, N), lambda i: (i, 0))
    q, k, v = pl.pallas_call(
        kernel,
        grid=(Mp // bm,),
        in_specs=[
            pl.BlockSpec((bm, K), lambda i: (i, 0)),
            pl.BlockSpec((1, K), lambda i: (0, 0)),
            pl.BlockSpec((1, K), lambda i: (0, 0)),
            pl.BlockSpec((K, N), lambda i: (0, 0)),
            pl.BlockSpec((K, N), lambda i: (0, 0)),
            pl.BlockSpec((K, N), lambda i: (0, 0)),
        ],
        out_specs=(row_spec, row_spec, row_spec),
        out_shape=(jax.ShapeDtypeStruct((Mp, N), x2d.dtype),
                   jax.ShapeDtypeStruct((Mp, N), x2d.dtype),
                   jax.ShapeDtypeStruct((Mp, N), x2d.dtype)),
        compiler_params=_compiler_params(("parallel",)),
    )(x2d, g.reshape(1, K), b.reshape(1, K), wq, wk, wv)
    return q[:M], k[:M], v[:M]


# --------------------------------------------------------------------------
# Nystrom attention kernel: grid over (batch, head_group), lane-dense blocks
# --------------------------------------------------------------------------
def nystrom_kernel(q_ref, k_ref, v_ref, ql_ref, kl_ref, z_ref, taps_ref,
                   o_ref, *, dh):
    """One (batch, head-group) slice per grid step.

    q,k,v : (1, npad, gw) blocks, feature layout '(h d)' (q pre-scaled)
    ql,kl : (1, m, gw) landmark means (computed in the wrapper)
    z     : (1, gh, m, m) Moore-Penrose pinv of attn2 (computed in the wrapper)
    taps  : (33, gw) per-feature residual-conv taps (taps[h] repeated dh lanes)
    """
    f32 = jnp.float32
    q = q_ref[0]                 # (npad, gw)
    k = k_ref[0]
    v = v_ref[0]
    ql = ql_ref[0]               # (m, gw)
    kl = kl_ref[0]
    z_all = z_ref[0]             # (gh, m, m)
    npad, gw = q.shape
    gh = gw // dh

    def softmax(t):
        t = t - jnp.max(t, axis=-1, keepdims=True)
        e = jnp.exp(t)
        return e * pl.reciprocal(jnp.sum(e, axis=-1, keepdims=True), approx=True)

    cdims = (((1,), (1,)), ((), ()))       # a @ b.T without materializing b.T
    outs = []
    for h in range(gh):
        sl = slice(h * dh, (h + 1) * dh)
        qh, kh, vh = q[:, sl], k[:, sl], v[:, sl]
        qlh, klh = ql[:, sl], kl[:, sl]
        zh = z_all[h].astype(f32)                                          # (m, m)
        attn1 = softmax(jax.lax.dot_general(qh, klh, cdims,
                                            preferred_element_type=f32))  # (npad, m)
        attn3 = softmax(jax.lax.dot_general(qlh, kh, cdims,
                                            preferred_element_type=f32))  # (m, npad)
        tmp = jnp.dot(attn3, vh.astype(f32), preferred_element_type=f32)  # (m, dh)
        tmp = jnp.dot(zh, tmp, preferred_element_type=f32)                # (m, dh)
        outs.append(jnp.dot(attn1, tmp, preferred_element_type=f32))      # (npad, dh)
    out = outs[0] if gh == 1 else jnp.concatenate(outs, axis=-1)          # (npad, gw)

    # residual depthwise conv (33 taps along tokens, per head) as shifted
    # multiply-adds: sublane rotation on the XLU + boundary mask, full-lane width.
    taps = taps_ref[...].astype(f32)                      # (ksz, gw)
    ksz = taps.shape[0]
    pad = ksz // 2
    vres = v.astype(f32)
    rows = jax.lax.broadcasted_iota(jnp.int32, (npad, 1), 0)
    for t in range(ksz):
        s = t - pad                                       # out[n] += taps[t]*v[n+s]
        shifted = vres if s == 0 else pltpu.roll(vres, shift=(-s) % npad, axis=0)
        contrib = taps[t:t + 1, :] * shifted
        if s != 0:
            valid = (rows + s >= 0) & (rows + s < npad)
            contrib = jnp.where(valid, contrib, 0.0)
        out = out + contrib

    o_ref[0] = out.astype(o_ref.dtype)


def pallas_nystrom(q, k, v, ql, kl, z, taps_exp, *, dh):
    """q,k,v: (B,npad,dim) in '(h d)' layout; ql,kl: (B,m,dim); z: (B,heads,m,m);
    taps_exp: (33, dim) f32."""
    B, npad, dim = q.shape
    m = ql.shape[1]
    ksz = taps_exp.shape[0]
    # head-group width: 128 lanes (unmasked stores, 2 heads at dh=64) when the
    # model dim allows it, otherwise the whole dim (toy sizes).
    if dim % 128 == 0 and 128 % dh == 0:
        gw = 128
    else:
        gw = dim
    n_groups = dim // gw
    gh = gw // dh

    kernel = functools.partial(nystrom_kernel, dh=dh)
    qkv_spec = pl.BlockSpec((1, npad, gw), lambda bi, gi: (bi, 0, gi))
    lm_spec = pl.BlockSpec((1, m, gw), lambda bi, gi: (bi, 0, gi))
    # TODO(synk): for very long MIL sequences add an npad-tiling grid axis
    # (stream attn1 rows / attn3 columns flash-style) so a single (b, group)
    # step never exceeds v7x's 64 MiB VMEM.
    return pl.pallas_call(
        kernel,
        grid=(B, n_groups),
        in_specs=[
            qkv_spec, qkv_spec, qkv_spec,
            lm_spec, lm_spec,
            pl.BlockSpec((1, gh, m, m), lambda bi, gi: (bi, gi, 0, 0)),
            pl.BlockSpec((ksz, gw), lambda bi, gi: (0, gi)),
        ],
        out_specs=pl.BlockSpec((1, npad, gw), lambda bi, gi: (bi, 0, gi)),
        out_shape=jax.ShapeDtypeStruct((B, npad, dim), q.dtype),
        compiler_params=_compiler_params(("parallel", "parallel")),
    )(q, k, v, ql, kl, z, taps_exp)


# --------------------------------------------------------------------------
# PPEG kernel: folded 49-tap depthwise conv, gridded over channel blocks
# --------------------------------------------------------------------------
def ppeg_kernel(xp_ref, w_ref, b_ref, o_ref, *, H, W):
    """xp: (B, H+6, W+6, bc) zero-padded NHWC map; w: (49, bc); b: (1, bc).
    The 5x5, 3x3 convs and the identity path are pre-folded into the 49 taps."""
    f32 = jnp.float32
    xp = xp_ref[...].astype(f32)
    w = w_ref[...].astype(f32)
    Bblk = xp.shape[0]
    bc = xp.shape[-1]
    acc = jnp.zeros((Bblk, H, W, bc), f32)
    tap = 0
    # TODO(synk): for large token maps, tile spatially (row blocks + 6-row halo)
    # and lay out as (B, H, C, W) so the dj shift becomes a lane rotate.
    for di in range(7):
        for dj in range(7):
            wv = w[tap:tap + 1, :].reshape(1, 1, 1, bc)
            acc = acc + xp[:, di:di + H, dj:dj + W, :] * wv
            tap += 1
    acc = acc + b_ref[...].astype(f32).reshape(1, 1, 1, bc)
    o_ref[...] = acc.astype(o_ref.dtype)


def pallas_ppeg(feat, w49, bias):
    B, H, W, C = feat.shape
    xpad = jnp.pad(feat, ((0, 0), (3, 3), (3, 3), (0, 0)))
    bc = 128 if C % 128 == 0 else C
    kernel = functools.partial(ppeg_kernel, H=H, W=W)
    return pl.pallas_call(
        kernel,
        grid=(C // bc,),
        in_specs=[
            pl.BlockSpec((B, H + 6, W + 6, bc), lambda c: (0, 0, 0, c)),
            pl.BlockSpec((49, bc), lambda c: (0, c)),
            pl.BlockSpec((1, bc), lambda c: (0, c)),
        ],
        out_specs=pl.BlockSpec((B, H, W, bc), lambda c: (0, 0, 0, c)),
        out_shape=jax.ShapeDtypeStruct((B, H, W, C), feat.dtype),
        compiler_params=_compiler_params(("parallel",)),
    )(xpad, w49, bias)


def _fold_ppeg_weights(p, C):
    """Fold 5x5, 3x3 depthwise weights + identity into the 7x7 tap grid.
    Assumes tap layout w[k*k, c] == torch w[c,0,di,dj] (cross-correlation)."""
    w7 = p["w7"].reshape(7, 7, C)
    w5 = p["w5"].reshape(5, 5, C)
    w3 = p["w3"].reshape(3, 3, C)
    w = w7
    w = w.at[1:6, 1:6, :].add(w5)
    w = w.at[2:5, 2:5, :].add(w3)
    w = w.at[3, 3, :].add(1.0)                       # the "+ cnn_feat" identity term
    b = (p["b7"] + p["b5"] + p["b3"]).reshape(1, C)
    return w.reshape(49, C), b


# --------------------------------------------------------------------------
# model glue (plain JAX: padding, reshapes, concat, landmark/pinv prepass)
# --------------------------------------------------------------------------
def moore_penrose_pinv(x, iters=6):
    """Batched Moore-Penrose iterative pseudo-inverse; matches the reference's
    *global* max(col)*max(row) normalisation over all (b, h)."""
    abs_x = jnp.abs(x)
    col = jnp.sum(abs_x, axis=-1)
    row = jnp.sum(abs_x, axis=-2)
    z = jnp.swapaxes(x, -1, -2) / (jnp.max(col) * jnp.max(row))
    I = jnp.eye(x.shape[-1], dtype=x.dtype)
    for _ in range(iters):
        xz = x @ z
        z = 0.25 * z @ (13.0 * I - xz @ (15.0 * I - xz @ (7.0 * I - xz)))
    return z


def translayer_forward(p, x, heads):
    b, n, dim = x.shape
    dh = dim // heads
    m = dim // 2                                      # num_landmarks
    scale = dh ** (-0.5)
    ap = p["attn"]

    # fused LayerNorm + QKV projection (bias-free); q comes out pre-scaled.
    q2d, k2d, v2d = pallas_ln_qkv(x.reshape(b * n, dim), p["ln_w"], p["ln_b"],
                                  ap["w_q"], ap["w_k"], ap["w_v"], scale=scale)

    rem = n % m
    pad = (m - rem) if rem > 0 else 0
    npad = n + pad
    l = npad // m                                     # == ceil(n / m)

    def pad_front(t2d):
        t = t2d.reshape(b, n, dim)
        if pad:
            t = jnp.pad(t, ((0, 0), (pad, 0), (0, 0)))      # F.pad at the front
        return t

    # projection has no bias, so zero-padding the q/k/v outputs is exact.
    q = pad_front(q2d)
    k = pad_front(k2d)
    v = pad_front(v2d)

    # landmark means (token-axis pooling keeps the '(h d)' feature layout)
    # TODO(synk): fold these segment means into the LN+QKV kernel epilogue to
    # avoid re-reading q and k from HBM for this prepass.
    ql = jnp.mean(q.reshape(b, m, l, dim), axis=2)    # scaled q landmarks
    kl = jnp.mean(k.reshape(b, m, l, dim), axis=2)

    # attn2 softmax (exact) + Moore-Penrose pinv hoisted out of the kernel:
    # tiny (b, heads, m, m) batched XLA matmuls.
    ql4 = ql.reshape(b, m, heads, dh)
    kl4 = kl.reshape(b, m, heads, dh)
    attn2 = jax.nn.softmax(jnp.einsum("bihd,bjhd->bhij", ql4, kl4), axis=-1)
    z = moore_penrose_pinv(attn2.astype(jnp.float32), iters=6)  # (b, heads, m, m)

    # per-feature residual-conv taps: taps[h, t] broadcast over head h's dh lanes
    taps_exp = jnp.repeat(ap["res_w"].astype(jnp.float32).T, dh, axis=1)  # (33, dim)

    out = pallas_nystrom(q, k, v, ql, kl, z, taps_exp, dh=dh)

    # output projection, drop the front padding, residual add
    out2d = pallas_matmul_bias(out.reshape(b * npad, dim),
                               ap["w_out"], ap["b_out"].reshape(1, -1))
    out = out2d.reshape(b, npad, dim)[:, -n:]
    return x + out


def ppeg_forward(p, x):
    B, N, C = x.shape
    H = W = int(math.ceil(math.sqrt(N)))
    add_length = H * W - N
    x = jnp.concatenate([x, x[:, :add_length, :]], axis=1)
    if H < 7:
        H = W = 7
        zero_pad = H * W - (N + add_length)
        x = jnp.concatenate([x, jnp.zeros((B, zero_pad, C), x.dtype)], axis=1)
        add_length += zero_pad
    feat = x.reshape(B, H, W, C)                      # NHWC, token index = h*W + w
    w49, bias = _fold_ppeg_weights(p, C)
    out = pallas_ppeg(feat, w49, bias)
    out = out.reshape(B, H * W, C)
    if add_length > 0:
        out = out[:, :-add_length]
    return out


def sattention_forward(params, x, heads=8):
    # default path: pos_pos=0, pos='ppeg', mask_enable=False, return_attn=False
    # TODO(synk): masking / return_attn branches are not exercised by the default forward.
    batch, num_patches, C = x.shape
    cls = jnp.broadcast_to(params["cls_token"], (batch, 1, C))
    x = jnp.concatenate([cls, x], axis=1)
    x = translayer_forward(params["layer1"], x, heads)
    feat = ppeg_forward(params["ppeg"], x[:, 1:, :])          # pos_pos == 0
    x = jnp.concatenate([x[:, :1, :], feat], axis=1)
    x = translayer_forward(params["layer2"], x, heads)
    # final LayerNorm is per-row, and only the cls row is returned
    cls_out = x[:, 0, :]
    return pallas_layernorm(cls_out, params["norm_w"], params["norm_b"])


# --------------------------------------------------------------------------
# deterministic parameter init (synthetic weights, shapes match the module)
# --------------------------------------------------------------------------
def init_params(key, dim=64, heads=8, peg_k=7, res_ksz=33):
    keys = jax.random.split(key, 16)

    def nrm(k, shape, s=0.05):
        return (s * jax.random.normal(k, shape)).astype(jnp.float32)

    def attn_params(k):
        k1, k2, k3, k4, k5, k6 = jax.random.split(k, 6)
        return dict(
            w_q=nrm(k1, (dim, dim)),               # columns 0:dim of to_qkv
            w_k=nrm(k2, (dim, dim)),               # columns dim:2*dim
            w_v=nrm(k3, (dim, dim)),               # columns 2*dim:3*dim
            w_out=nrm(k4, (dim, dim)),             # Linear(inner, dim)
            b_out=nrm(k5, (dim,)),
            res_w=nrm(k6, (heads, res_ksz)),       # Conv2d(heads, heads, (33,1), groups=heads)
        )

    def layer_params(k):
        return dict(
            ln_w=jnp.ones((dim,), jnp.float32),
            ln_b=jnp.zeros((dim,), jnp.float32),
            attn=attn_params(k),
        )

    return dict(
        cls_token=nrm(keys[0], (1, 1, dim), 1.0),
        layer1=layer_params(keys[1]),
        layer2=layer_params(keys[2]),
        norm_w=jnp.ones((dim,), jnp.float32),
        norm_b=jnp.zeros((dim,), jnp.float32),
        ppeg=dict(                                  # depthwise Conv2d k=7,5,3, groups=dim
            w7=nrm(keys[3], (peg_k * peg_k, dim)), b7=nrm(keys[4], (dim,)),
            w5=nrm(keys[5], (5 * 5, dim)),         b5=nrm(keys[6], (dim,)),
            w3=nrm(keys[7], (3 * 3, dim)),         b3=nrm(keys[8], (dim,)),
        ),
    )


# --------------------------------------------------------------------------
if __name__ == "__main__":
    key = jax.random.PRNGKey(0)
    kp, kx = jax.random.split(key)

    dim, heads = 64, 8                 # small stand-in for mlp_dim=512, head=8
    batch, num_patches = 2, 40         # -> seq 41 with cls; PPEG grid 7x7

    params = init_params(kp, dim=dim, heads=heads)
    x = jax.random.normal(kx, (batch, num_patches, dim), jnp.float32)

    logits = sattention_forward(params, x, heads=heads)
    logits = jax.block_until_ready(logits)

    assert logits.shape == (batch, dim)
    print("KERNEL_OK")
</pallas_src>

<mosaic_0001>
module attributes {stable_mosaic.version = 11 : i64} {
  func.func @ln_qkv_kernel(%arg0: i32, %arg1: memref<88x64xf32, #tpu.memory_space<vmem>>, %arg2: memref<1x64xf32, #tpu.memory_space<vmem>>, %arg3: memref<1x64xf32, #tpu.memory_space<vmem>>, %arg4: memref<64x64xf32, #tpu.memory_space<vmem>>, %arg5: memref<64x64xf32, #tpu.memory_space<vmem>>, %arg6: memref<64x64xf32, #tpu.memory_space<vmem>>, %arg7: memref<88x64xf32, #tpu.memory_space<vmem>>, %arg8: memref<88x64xf32, #tpu.memory_space<vmem>>, %arg9: memref<88x64xf32, #tpu.memory_space<vmem>>) attributes {dimension_semantics = [#tpu.dimension_semantics<parallel>], iteration_bounds = array<i64: 1>, scalar_prefetch = 0 : i64, scratch_operands = 0 : i64, tpu.core_type = #tpu.core_type<tc>, window_params = [{transform_indices = @transform_0, window_bounds = array<i64: 88, 64>}, {pipeline_mode = #tpu.pipeline_mode<synchronous>, transform_indices = @transform_1, window_bounds = array<i64: 1, 64>}, {pipeline_mode = #tpu.pipeline_mode<synchronous>, transform_indices = @transform_2, window_bounds = array<i64: 1, 64>}, {pipeline_mode = #tpu.pipeline_mode<synchronous>, transform_indices = @transform_3, window_bounds = array<i64: 64, 64>}, {pipeline_mode = #tpu.pipeline_mode<synchronous>, transform_indices = @transform_4, window_bounds = array<i64: 64, 64>}, {pipeline_mode = #tpu.pipeline_mode<synchronous>, transform_indices = @transform_5, window_bounds = array<i64: 64, 64>}, {transform_indices = @transform_6, window_bounds = array<i64: 88, 64>}, {transform_indices = @transform_7, window_bounds = array<i64: 88, 64>}, {transform_indices = @transform_8, window_bounds = array<i64: 88, 64>}]} {
    %c0 = arith.constant 0 : index
    %c0_0 = arith.constant 0 : index
    %0 = vector.load %arg1[%c0, %c0_0] : memref<88x64xf32, #tpu.memory_space<vmem>>, vector<88x64xf32>
    %cst = arith.constant dense<0.000000e+00> : vector<88xf32>
    %1 = vector.multi_reduction <add>, %0, %cst [1] : vector<88x64xf32> to vector<88xf32>
    %2 = vector.shape_cast %1 : vector<88xf32> to vector<88x1xf32>
    %cst_1 = arith.constant 6.400000e+01 : f32
    %3 = vector.broadcast %cst_1 : f32 to vector<88x1xf32>
    %4 = arith.divf %2, %3 : vector<88x1xf32>
    %5 = vector.broadcast %4 : vector<88x1xf32> to vector<88x64xf32>
    %6 = arith.subf %0, %5 : vector<88x64xf32>
    %7 = arith.mulf %6, %6 : vector<88x64xf32>
    %cst_2 = arith.constant dense<0.000000e+00> : vector<88xf32>
    %8 = vector.multi_reduction <add>, %7, %cst_2 [1] : vector<88x64xf32> to vector<88xf32>
    %9 = vector.shape_cast %8 : vector<88xf32> to vector<88x1xf32>
    %cst_3 = arith.constant 6.400000e+01 : f32
    %10 = vector.broadcast %cst_3 : f32 to vector<88x1xf32>
    %11 = arith.divf %9, %10 : vector<88x1xf32>
    %12 = vector.broadcast %4 : vector<88x1xf32> to vector<88x64xf32>
    %13 = arith.subf %0, %12 : vector<88x64xf32>
    %cst_4 = arith.constant 9.99999974E-6 : f32
    %14 = vector.broadcast %cst_4 : f32 to vector<88x1xf32>
    %15 = arith.addf %11, %14 : vector<88x1xf32>
    %16 = math.rsqrt %15 : vector<88x1xf32>
    %17 = vector.broadcast %16 : vector<88x1xf32> to vector<88x64xf32>
    %18 = arith.mulf %13, %17 : vector<88x64xf32>
    %c0_5 = arith.constant 0 : index
    %c0_6 = arith.constant 0 : index
    %19 = vector.load %arg2[%c0_5, %c0_6] : memref<1x64xf32, #tpu.memory_space<vmem>>, vector<1x64xf32>
    %20 = vector.broadcast %19 : vector<1x64xf32> to vector<88x64xf32>
    %21 = arith.mulf %18, %20 : vector<88x64xf32>
    %c0_7 = arith.constant 0 : index
    %c0_8 = arith.constant 0 : index
    %22 = vector.load %arg3[%c0_7, %c0_8] : memref<1x64xf32, #tpu.memory_space<vmem>>, vector<1x64xf32>
    %23 = vector.broadcast %22 : vector<1x64xf32> to vector<88x64xf32>
    %24 = arith.addf %21, %23 : vector<88x64xf32>
    %c0_9 = arith.constant 0 : index
    %c0_10 = arith.constant 0 : index
    %25 = vector.load %arg4[%c0_9, %c0_10] : memref<64x64xf32, #tpu.memory_space<vmem>>, vector<64x64xf32>
    %cst_11 = arith.constant dense<0.000000e+00> : vector<88x64xf32>
    %26 = tpu.matmul %24, %25, %cst_11 {dimension_numbers = #tpu.dot_dimension_numbers<[1], [0], [0], [1], [0, 0, 1, 1], [], []>} : vector<88x64xf32>, vector<64x64xf32>, vector<88x64xf32> -> vector<88x64xf32>
    %cst_12 = arith.constant 0.353553385 : f32
    %27 = vector.broadcast %cst_12 : f32 to vector<88x64xf32>
    %28 = arith.mulf %26, %27 : vector<88x64xf32>
    %c0_13 = arith.constant 0 : index
    %c0_14 = arith.constant 0 : index
    %29 = vector.load %arg5[%c0_13, %c0_14] : memref<64x64xf32, #tpu.memory_space<vmem>>, vector<64x64xf32>
    %cst_15 = arith.constant dense<0.000000e+00> : vector<88x64xf32>
    %30 = tpu.matmul %24, %29, %cst_15 {dimension_numbers = #tpu.dot_dimension_numbers<[1], [0], [0], [1], [0, 0, 1, 1], [], []>} : vector<88x64xf32>, vector<64x64xf32>, vector<88x64xf32> -> vector<88x64xf32>
    %c0_16 = arith.constant 0 : index
    %c0_17 = arith.constant 0 : index
    %31 = vector.load %arg6[%c0_16, %c0_17] : memref<64x64xf32, #tpu.memory_space<vmem>>, vector<64x64xf32>
    %cst_18 = arith.constant dense<0.000000e+00> : vector<88x64xf32>
    %32 = tpu.matmul %24, %31, %cst_18 {dimension_numbers = #tpu.dot_dimension_numbers<[1], [0], [0], [1], [0, 0, 1, 1], [], []>} : vector<88x64xf32>, vector<64x64xf32>, vector<88x64xf32> -> vector<88x64xf32>
    %c0_19 = arith.constant 0 : index
    %c0_20 = arith.constant 0 : index
    %33 = vector.load %arg7[%c0_19, %c0_20] : memref<88x64xf32, #tpu.memory_space<vmem>>, vector<88x64xf32>
    tpu.vector_store %arg7[%c0_19, %c0_20], %28 {strides = array<i32>} : memref<88x64xf32, #tpu.memory_space<vmem>>, vector<88x64xf32>,
    %c0_21 = arith.constant 0 : index
    %c0_22 = arith.constant 0 : index
    %34 = vector.load %arg8[%c0_21, %c0_22] : memref<88x64xf32, #tpu.memory_space<vmem>>, vector<88x64xf32>
    tpu.vector_store %arg8[%c0_21, %c0_22], %30 {strides = array<i32>} : memref<88x64xf32, #tpu.memory_space<vmem>>, vector<88x64xf32>,
    %c0_23 = arith.constant 0 : index
    %c0_24 = arith.constant 0 : index
    %35 = vector.load %arg9[%c0_23, %c0_24] : memref<88x64xf32, #tpu.memory_space<vmem>>, vector<88x64xf32>
    tpu.vector_store %arg9[%c0_23, %c0_24], %32 {strides = array<i32>} : memref<88x64xf32, #tpu.memory_space<vmem>>, vector<88x64xf32>,
    return
  }
  func.func @transform_0(%arg0: i32) -> (i32, i32) {
    %c0_i32 = arith.constant 0 : i32
    %c0_i32_0 = arith.constant 0 : i32
    return %arg0, %c0_i32 : i32, i32
  }
  func.func @transform_1(%arg0: i32) -> (i32, i32) {
    %c0_i32 = arith.constant 0 : i32
    %c0_i32_0 = arith.constant 0 : i32
    %c0_i32_1 = arith.constant 0 : i32
    return %c0_i32, %c0_i32_0 : i32, i32
  }
  func.func @transform_2(%arg0: i32) -> (i32, i32) {
    %c0_i32 = arith.constant 0 : i32
    %c0_i32_0 = arith.constant 0 : i32
    %c0_i32_1 = arith.constant 0 : i32
    return %c0_i32, %c0_i32_0 : i32, i32
  }
  func.func @transform_3(%arg0: i32) -> (i32, i32) {
    %c0_i32 = arith.constant 0 : i32
    %c0_i32_0 = arith.constant 0 : i32
    %c0_i32_1 = arith.constant 0 : i32
    return %c0_i32, %c0_i32_0 : i32, i32
  }
  func.func @transform_4(%arg0: i32) -> (i32, i32) {
    %c0_i32 = arith.constant 0 : i32
    %c0_i32_0 = arith.constant 0 : i32
    %c0_i32_1 = arith.constant 0 : i32
    return %c0_i32, %c0_i32_0 : i32, i32
  }
  func.func @transform_5(%arg0: i32) -> (i32, i32) {
    %c0_i32 = arith.constant 0 : i32
    %c0_i32_0 = arith.constant 0 : i32
    %c0_i32_1 = arith.constant 0 : i32
    return %c0_i32, %c0_i32_0 : i32, i32
  }
  func.func @transform_6(%arg0: i32) -> (i32, i32) {
    %c0_i32 = arith.constant 0 : i32
    %c0_i32_0 = arith.constant 0 : i32
    return %arg0, %c0_i32 : i32, i32
  }
  func.func @transform_7(%arg0: i32) -> (i32, i32) {
    %c0_i32 = arith.constant 0 : i32
    %c0_i32_0 = arith.constant 0 : i32
    return %arg0, %c0_i32 : i32, i32
  }
  func.func @transform_8(%arg0: i32) -> (i32, i32) {
    %c0_i32 = arith.constant 0 : i32
    %c0_i32_0 = arith.constant 0 : i32
    return %arg0, %c0_i32 : i32, i32
  }
}

</mosaic_0001>

<llo_original>
// kernel: tpu_custom_call.1
$region0: #{tpu_custom_call.1}
  #allocation0 [shape = 'u32[]', space=smem, size = 0x4, offset = 0x4, fixed_abs, tag = 'smem constant byte address 0x4 - core index']
  #allocation1 [shape = 'u32[144,128]{1,0:T(1,128)}', space=vmem, size = 0x12000, scoped, tag = 'internal scratch']
  %s0 = inlined_call_operand.vmem [shape: f32[88,64], index: 0, kind: input, shape index: {}]
  %s1 = inlined_call_operand.vmem [shape: f32[1,64], index: 1, kind: input, shape index: {}]
  %s2 = inlined_call_operand.vmem [shape: f32[1,64], index: 2, kind: input, shape index: {}]
  %s3 = inlined_call_operand.vmem [shape: f32[64,64], index: 3, kind: input, shape index: {}]
  %s4 = inlined_call_operand.vmem [shape: f32[64,64], index: 4, kind: input, shape index: {}]
  %s5 = inlined_call_operand.hbm [shape: f32[64,64], index: 5, kind: input, shape index: {}]
  %s6 = inlined_call_operand.vmem [shape: f32[88,64], index: 6, kind: output, shape index: {0}]
  %s7 = inlined_call_operand.vmem [shape: f32[88,64], index: 7, kind: output, shape index: {1}]
  %s8 = inlined_call_operand.vmem [shape: f32[88,64], index: 8, kind: output, shape index: {2}]
  %9 = xla_tuple %s6, %s7, %s8
  %s10 = sld [smem:[#allocation0]]
  $region54: #{tpu_custom_call.1} parent=0
    _
  %s12 = ssub.s32 1, %s10
  %s13 = scalar_select 0, %s12, %s10
  $region1: #{tpu_custom_call.1} parent=0
    #allocation2 [shape = 'u8[32768]{0}', space=vmem, size = 0x8000, scoped, tag = 'input window, operand 5, single buffered']
    #allocation3 [shape = 's32[1]{0}', space=sflag, size = 0x4, scoped, tag = 'scoped memory for tpu_custom_call.1']
    %14 = vsyncpa [#allocation3], 0
    // Predicated region
    $region2: #{tpu_custom_call.1} parent=1 // pred_check
      _
    $region3: #{tpu_custom_call.1} parent=1 // pred_check_branch
      %16 = sbr.rel (0) target = $region5
    $region4: #{tpu_custom_call.1} parent=1 // pred_region
      _
    $region5: #{tpu_custom_call.1} parent=1 // pred_fallthru
      _
    // Predicated region
    $region6: #{tpu_custom_call.1} parent=1 // pred_check
      _
    $region7: #{tpu_custom_call.1} parent=1 // pred_check_branch
      %18 = sbr.rel (0) target = $region9
    $region8: #{tpu_custom_call.1} parent=1 // pred_region
      _
    $region9: #{tpu_custom_call.1} parent=1 // pred_fallthru
      _
    // Predicated region
    $region10: #{tpu_custom_call.1} parent=1 // pred_check
      _
    $region11: #{tpu_custom_call.1} parent=1 // pred_check_branch
      %20 = sbr.rel (0) target = $region13
    $region12: #{tpu_custom_call.1} parent=1 // pred_region
      _
    $region13: #{tpu_custom_call.1} parent=1 // pred_fallthru
      _
    // Predicated region
    $region14: #{tpu_custom_call.1} parent=1 // pred_check
      _
    $region15: #{tpu_custom_call.1} parent=1 // pred_check_branch
      %22 = sbr.rel (0) target = $region17
    $region16: #{tpu_custom_call.1} parent=1 // pred_region
      _
    $region17: #{tpu_custom_call.1} parent=1 // pred_fallthru
      _
    // Predicated region
    $region18: #{tpu_custom_call.1} parent=1 // pred_check
      _
    $region19: #{tpu_custom_call.1} parent=1 // pred_check_branch
      %24 = sbr.rel (0) target = $region21
    $region20: #{tpu_custom_call.1} parent=1 // pred_region
      _
    $region21: #{tpu_custom_call.1} parent=1 // pred_fallthru
      _
    // Predicated region
    $region22: #{tpu_custom_call.1} parent=1 // pred_check
      _
    $region23: #{tpu_custom_call.1} parent=1 // pred_check_branch
      %26 = sbr.rel (0) target = $region25
    $region24: #{tpu_custom_call.1} parent=1 // pred_region
      %s28 = ssub.s32 1024, 1024
      %29 = vsyncadd [#allocation3], %s28
      %s30 = sshll.u32 [#allocation2], 4
      %s31 = int_to_ptr.vmem [resolvable:$true] %s30
      %36 = dma.hbm_to_vmem [thread:$0]  %s5, 1024, %s31, [#allocation3], 128, 128, 8
    $region25: #{tpu_custom_call.1} parent=1 // pred_fallthru
      _
    // Predicated region
    $region26: #{tpu_custom_call.1} parent=1 // pred_check
      _
    $region27: #{tpu_custom_call.1} parent=1 // pred_check_branch
      %38 = sbr.rel (0) target = $region29
    $region28: #{tpu_custom_call.1} parent=1 // pred_region
      %39 = dma.done [#allocation3], 1024
    $region29: #{tpu_custom_call.1} parent=1 // pred_fallthru
      _
    %v40 = vld [vmem:[%s0] sm:$0xff]
    %v41 = vld [vmem:[%s0 + $0x8] sm:$0xff]
    %v42 = vld [vmem:[%s0 + $0x10] sm:$0xff]
    %v43 = vld [vmem:[%s0 + $0x18] sm:$0xff]
    %v44 = vld [vmem:[%s0 + $0x20] sm:$0xff]
    %v45 = vld [vmem:[%s0 + $0x28] sm:$0xff]
    %v46 = vld [vmem:[%s0 + $0x30] sm:$0xff]
    %v47 = vld [vmem:[%s0 + $0x38] sm:$0xff]
    %v48 = vld [vmem:[%s0 + $0x40] sm:$0xff]
    %v49 = vld [vmem:[%s0 + $0x48] sm:$0xff]
    %v50 = vld [vmem:[%s0 + $0x50] sm:$0xff]
    %vm51 = vcmask 523264
    %v52 = vsel %vm51, %v40, 0.0
    %53 = vadd.xlane.f32.xlu0 %v52
    %v54 = vpop.xlane.xlu0 %53
    %v55 = vsel %vm51, %v41, 0.0
    %56 = vadd.xlane.f32.xlu0 %v55
    %v57 = vpop.xlane.xlu0 %56
    %v58 = vsel %vm51, %v42, 0.0
    %59 = vadd.xlane.f32.xlu0 %v58
    %v60 = vpop.xlane.xlu0 %59
    %v61 = vsel %vm51, %v43, 0.0
    %62 = vadd.xlane.f32.xlu0 %v61
    %v63 = vpop.xlane.xlu0 %62
    %v64 = vsel %vm51, %v44, 0.0
    %65 = vadd.xlane.f32.xlu0 %v64
    %v66 = vpop.xlane.xlu0 %65
    %v67 = vsel %vm51, %v45, 0.0
    %68 = vadd.xlane.f32.xlu0 %v67
    %v69 = vpop.xlane.xlu0 %68
    %v70 = vsel %vm51, %v46, 0.0
    %71 = vadd.xlane.f32.xlu0 %v70
    %v72 = vpop.xlane.xlu0 %71
    %v73 = vsel %vm51, %v47, 0.0
    %74 = vadd.xlane.f32.xlu0 %v73
    %v75 = vpop.xlane.xlu0 %74
    %v76 = vsel %vm51, %v48, 0.0
    %77 = vadd.xlane.f32.xlu0 %v76
    %v78 = vpop.xlane.xlu0 %77
    %v79 = vsel %vm51, %v49, 0.0
    %80 = vadd.xlane.f32.xlu0 %v79
    %v81 = vpop.xlane.xlu0 %80
    %v82 = vsel %vm51, %v50, 0.0
    %83 = vadd.xlane.f32.xlu0 %v82
    %v84 = vpop.xlane.xlu0 %83
    %v85 = vrcp.pop 64.0
    %v86 = vmul.f32 %v54, %v85
    %v87 = vmul.f32 %v57, %v85
    %v88 = vmul.f32 %v60, %v85
    %v89 = vmul.f32 %v63, %v85
    %v90 = vmul.f32 %v66, %v85
    %v91 = vmul.f32 %v69, %v85
    %v92 = vmul.f32 %v72, %v85
    %v93 = vmul.f32 %v75, %v85
    %v94 = vmul.f32 %v78, %v85
    %v95 = vmul.f32 %v81, %v85
    %v96 = vmul.f32 %v84, %v85
    %v97 = vsub.f32 %v40, %v86
    %v98 = vsub.f32 %v41, %v87
    %v99 = vsub.f32 %v42, %v88
    %v100 = vsub.f32 %v43, %v89
    %v101 = vsub.f32 %v44, %v90
    %v102 = vsub.f32 %v45, %v91
    %v103 = vsub.f32 %v46, %v92
    %v104 = vsub.f32 %v47, %v93
    %v105 = vsub.f32 %v48, %v94
    %v106 = vsub.f32 %v49, %v95
    %v107 = vsub.f32 %v50, %v96
    %v108 = vmul.f32 %v97, %v97
    %v109 = vmul.f32 %v98, %v98
    %v110 = vmul.f32 %v99, %v99
    %v111 = vmul.f32 %v100, %v100
    %v112 = vmul.f32 %v101, %v101
    %v113 = vmul.f32 %v102, %v102
    %v114 = vmul.f32 %v103, %v103
    %v115 = vmul.f32 %v104, %v104
    %v116 = vmul.f32 %v105, %v105
    %v117 = vmul.f32 %v106, %v106
    %v118 = vmul.f32 %v107, %v107
    %v119 = vsel %vm51, %v108, 0.0
    %120 = vadd.xlane.f32.xlu0 %v119
    %v121 = vpop.xlane.xlu0 %120
    %v122 = vsel %vm51, %v109, 0.0
    %123 = vadd.xlane.f32.xlu0 %v122
    %v124 = vpop.xlane.xlu0 %123
    %v125 = vsel %vm51, %v110, 0.0
    %126 = vadd.xlane.f32.xlu0 %v125
    %v127 = vpop.xlane.xlu0 %126
    %v128 = vsel %vm51, %v111, 0.0
    %129 = vadd.xlane.f32.xlu0 %v128
    %v130 = vpop.xlane.xlu0 %129
    %v131 = vsel %vm51, %v112, 0.0
    %132 = vadd.xlane.f32.xlu0 %v131
    %v133 = vpop.xlane.xlu0 %132
    %v134 = vsel %vm51, %v113, 0.0
    %135 = vadd.xlane.f32.xlu0 %v134
    %v136 = vpop.xlane.xlu0 %135
    %v137 = vsel %vm51, %v114, 0.0
    %138 = vadd.xlane.f32.xlu0 %v137
    %v139 = vpop.xlane.xlu0 %138
    %v140 = vsel %vm51, %v115, 0.0
    %141 = vadd.xlane.f32.xlu0 %v140
    %v142 = vpop.xlane.xlu0 %141
    %v143 = vsel %vm51, %v116, 0.0
    %144 = vadd.xlane.f32.xlu0 %v143
    %v145 = vpop.xlane.xlu0 %144
    %v146 = vsel %vm51, %v117, 0.0
    %147 = vadd.xlane.f32.xlu0 %v146
    %v148 = vpop.xlane.xlu0 %147
    %v149 = vsel %vm51, %v118, 0.0
    %150 = vadd.xlane.f32.xlu0 %v149
    %v151 = vpop.xlane.xlu0 %150
    %v152 = vmul.f32 %v121, %v85
    %v153 = vmul.f32 %v124, %v85
    %v154 = vmul.f32 %v127, %v85
    %v155 = vmul.f32 %v130, %v85
    %v156 = vmul.f32 %v133, %v85
    %v157 = vmul.f32 %v136, %v85
    %v158 = vmul.f32 %v139, %v85
    %v159 = vmul.f32 %v142, %v85
    %v160 = vmul.f32 %v145, %v85
    %v161 = vmul.f32 %v148, %v85
    %v162 = vmul.f32 %v151, %v85
    %v163 = vadd.f32 %v152, 1e-05
    %v164 = vadd.f32 %v153, 1e-05
    %v165 = vadd.f32 %v154, 1e-05
    %v166 = vadd.f32 %v155, 1e-05
    %v167 = vadd.f32 %v156, 1e-05
    %v168 = vadd.f32 %v157, 1e-05
    %v169 = vadd.f32 %v158, 1e-05
    %v170 = vadd.f32 %v159, 1e-05
    %v171 = vadd.f32 %v160, 1e-05
    %v172 = vadd.f32 %v161, 1e-05
    %v173 = vadd.f32 %v162, 1e-05
    %v174 = vrsqrt.pop %v163
    %v175 = vrsqrt.pop %v164
    %v176 = vrsqrt.pop %v165
    %v177 = vrsqrt.pop %v166
    %v178 = vrsqrt.pop %v167
    %v179 = vrsqrt.pop %v168
    %v180 = vrsqrt.pop %v169
    %v181 = vrsqrt.pop %v170
    %v182 = vrsqrt.pop %v171
    %v183 = vrsqrt.pop %v172
    %v184 = vrsqrt.pop %v173
    %v185 = vmul.f32 %v97, %v174
    %v186 = vmul.f32 %v98, %v175
    %v187 = vmul.f32 %v99, %v176
    %v188 = vmul.f32 %v100, %v177
    %v189 = vmul.f32 %v101, %v178
    %v190 = vmul.f32 %v102, %v179
    %v191 = vmul.f32 %v103, %v180
    %v192 = vmul.f32 %v104, %v181
    %v193 = vmul.f32 %v105, %v182
    %v194 = vmul.f32 %v106, %v183
    %v195 = vmul.f32 %v107, %v184
    %v196 = vld [vmem:[%s1] sm:$0x1]
    %v198 = vlaneseq
    %v199 = vshrl.u32 %v198, 7
    %v200 = vsub.s32 0, %v199
    %v201 = vrot.slane %v196, %v200
    %v203 = vmul.f32 %v185, %v201
    %v204 = vmul.f32 %v186, %v201
    %v205 = vmul.f32 %v187, %v201
    %v206 = vmul.f32 %v188, %v201
    %v207 = vmul.f32 %v189, %v201
    %v208 = vmul.f32 %v190, %v201
    %v209 = vmul.f32 %v191, %v201
    %v210 = vmul.f32 %v192, %v201
    %v211 = vmul.f32 %v193, %v201
    %v212 = vmul.f32 %v194, %v201
    %v213 = vmul.f32 %v195, %v201
    %v214 = vld [vmem:[%s2] sm:$0x1]
    %v216 = vlaneseq
    %v217 = vshrl.u32 %v216, 7
    %v218 = vsub.s32 0, %v217
    %v219 = vrot.slane %v214, %v218
    %v221 = vadd.f32 %v203, %v219
    %v222 = vadd.f32 %v204, %v219
    %v223 = vadd.f32 %v205, %v219
    %v224 = vadd.f32 %v206, %v219
    %v225 = vadd.f32 %v207, %v219
    %v226 = vadd.f32 %v208, %v219
    %v227 = vadd.f32 %v209, %v219
    %v228 = vadd.f32 %v210, %v219
    %v229 = vadd.f32 %v211, %v219
    %v230 = vadd.f32 %v212, %v219
    %v231 = vadd.f32 %v213, %v219
    %v232 = vld [vmem:[%s3] sm:$0xff]
    %v233 = vld [vmem:[%s3 + $0x8] sm:$0xff]
    %v234 = vld [vmem:[%s3 + $0x10] sm:$0xff]
    %v235 = vld [vmem:[%s3 + $0x18] sm:$0xff]
    %v236 = vld [vmem:[%s3 + $0x20] sm:$0xff]
    %v237 = vld [vmem:[%s3 + $0x28] sm:$0xff]
    %v238 = vld [vmem:[%s3 + $0x30] sm:$0xff]
    %v239 = vld [vmem:[%s3 + $0x38] sm:$0xff]
    %v241 = vsel %vm51, %v221, 0
    %v244 = vsel %vm51, %v222, 0
    %v247 = vsel %vm51, %v223, 0
    %v250 = vsel %vm51, %v224, 0
    %v253 = vsel %vm51, %v225, 0
    %v256 = vsel %vm51, %v226, 0
    %v259 = vsel %vm51, %v227, 0
    %v262 = vsel %vm51, %v228, 0
    %v265 = vsel %vm51, %v229, 0
    %v268 = vsel %vm51, %v230, 0
    %v271 = vsel %vm51, %v231, 0
    %273 = vmatprep.subr.mxu0 0.0
    %274 = vmatpush1.msra.mxu0 %v232
    %275 = vmatprep.subr.mxu0 0.0
    %276 = vmatpush1.msra.mxu0 %v233
    %277 = vmatprep.subr.mxu0 0.0
    %278 = vmatpush1.msra.mxu0 %v234
    %279 = vmatprep.subr.mxu0 0.0
    %280 = vmatpush1.msra.mxu0 %v235
    %281 = vmatprep.subr.mxu0 0.0
    %282 = vmatpush1.msra.mxu0 %v236
    %283 = vmatprep.subr.mxu0 0.0
    %284 = vmatpush1.msra.mxu0 %v237
    %285 = vmatprep.subr.mxu0 0.0
    %286 = vmatpush1.msra.mxu0 %v238
    %287 = vmatprep.subr.mxu0 0.0
    %288 = vmatpush1.msra.mxu0 %v239
    %289 = vmatprep.subr.mxu0 0.0
    %290 = vmatpush1.msra.mxu0 0.0
    %291 = vmatprep.subr.mxu0 0.0
    %292 = vmatpush1.msra.mxu0 0.0
    %293 = vmatprep.subr.mxu0 0.0
    %294 = vmatpush1.msra.mxu0 0.0
    %295 = vmatprep.subr.mxu0 0.0
    %296 = vmatpush1.msra.mxu0 0.0
    %297 = vmatprep.subr.mxu0 0.0
    %298 = vmatpush1.msra.mxu0 0.0
    %299 = vmatprep.subr.mxu0 0.0
    %300 = vmatpush1.msra.mxu0 0.0
    %301 = vmatprep.subr.mxu0 0.0
    %302 = vmatpush1.msra.mxu0 0.0
    %303 = vmatprep.subr.mxu0 0.0
    %304 = vmatpush1.msra.mxu0 0.0
    %305 = vmatprep.subr.mxu0 0.0
    %306 = vmatpush1.msra.mxu0 0.0
    %307 = vmatprep.subr.mxu0 0.0
    %308 = vmatpush1.msra.mxu0 0.0
    %309 = vmatprep.subr.mxu0 0.0
    %310 = vmatpush1.msra.mxu0 0.0
    %311 = vmatprep.subr.mxu0 0.0
    %312 = vmatpush1.msra.mxu0 0.0
    %313 = vmatprep.subr.mxu0 0.0
    %314 = vmatpush1.msra.mxu0 0.0
    %315 = vmatprep.subr.mxu0 0.0
    %316 = vmatpush1.msra.mxu0 0.0
    %317 = vmatprep.subr.mxu0 0.0
    %318 = vmatpush1.msra.mxu0 0.0
    %319 = vmatprep.subr.mxu0 0.0
    %320 = vmatpush1.msra.mxu0 0.0
    %321 = vmatprep.subr.mxu0 0.0
    %322 = vmatpush1.msra.mxu0 0.0
    %323 = vmatprep.subr.mxu0 0.0
    %324 = vmatpush1.msra.mxu0 0.0
    %325 = vmatprep.subr.mxu0 0.0
    %326 = vmatpush1.msra.mxu0 0.0
    %327 = vmatprep.subr.mxu0 0.0
    %328 = vmatpush1.msra.mxu0 0.0
    %329 = vmatprep.subr.mxu0 0.0
    %330 = vmatpush1.msra.mxu0 0.0
    %331 = vmatprep.subr.mxu0 0.0
    %332 = vmatpush1.msra.mxu0 0.0
    %333 = vmatprep.subr.mxu0 0.0
    %334 = vmatpush1.msra.mxu0 0.0
    %335 = vmatprep.subr.mxu0 0.0
    %336 = vmatpush1.msra.mxu0 0.0
    %337 = vmatprep.mubr.f32.mxu0 0.0
    %338 = vmatmul.mubr.f32.gmra.mrb[0].mxu0 %v241
    %v339 = vpop.f32.mrb[0].mxu0
    %v340 = vadd.f32 0.0, %v339
    %v341 = vpop.f32.mrb[0].mxu0
    %342 = vmatprep.mubr.f32.mxu0 0.0
    %343 = vmatmul.mubr.f32.gmra.mrb[0].mxu0 %v244
    %v344 = vpop.f32.mrb[0].mxu0
    %v345 = vadd.f32 0.0, %v344
    %v346 = vpop.f32.mrb[0].mxu0
    %347 = vmatprep.mubr.f32.mxu0 0.0
    %348 = vmatmul.mubr.f32.gmra.mrb[0].mxu0 %v247
    %v349 = vpop.f32.mrb[0].mxu0
    %v350 = vadd.f32 0.0, %v349
    %v351 = vpop.f32.mrb[0].mxu0
    %352 = vmatprep.mubr.f32.mxu0 0.0
    %353 = vmatmul.mubr.f32.gmra.mrb[0].mxu0 %v250
    %v354 = vpop.f32.mrb[0].mxu0
    %v355 = vadd.f32 0.0, %v354
    %v356 = vpop.f32.mrb[0].mxu0
    %357 = vmatprep.mubr.f32.mxu0 0.0
    %358 = vmatmul.mubr.f32.gmra.mrb[0].mxu0 %v253
    %v359 = vpop.f32.mrb[0].mxu0
    %v360 = vadd.f32 0.0, %v359
    %v361 = vpop.f32.mrb[0].mxu0
    %362 = vmatprep.mubr.f32.mxu0 0.0
    %363 = vmatmul.mubr.f32.gmra.mrb[0].mxu0 %v256
    %v364 = vpop.f32.mrb[0].mxu0
    %v365 = vadd.f32 0.0, %v364
    %v366 = vpop.f32.mrb[0].mxu0
    %367 = vmatprep.mubr.f32.mxu0 0.0
    %368 = vmatmul.mubr.f32.gmra.mrb[0].mxu0 %v259
    %v369 = vpop.f32.mrb[0].mxu0
    %v370 = vadd.f32 0.0, %v369
    %v371 = vpop.f32.mrb[0].mxu0
    %372 = vmatprep.mubr.f32.mxu0 0.0
    %373 = vmatmul.mubr.f32.gmra.mrb[0].mxu0 %v262
    %v374 = vpop.f32.mrb[0].mxu0
    %v375 = vadd.f32 0.0, %v374
    %v376 = vpop.f32.mrb[0].mxu0
    %377 = vmatprep.mubr.f32.mxu0 0.0
    %378 = vmatmul.mubr.f32.gmra.mrb[0].mxu0 %v265
    %v379 = vpop.f32.mrb[0].mxu0
    %v380 = vadd.f32 0.0, %v379
    %v381 = vpop.f32.mrb[0].mxu0
    %382 = vmatprep.mubr.f32.mxu0 0.0
    %383 = vmatmul.mubr.f32.gmra.mrb[0].mxu0 %v268
    %v384 = vpop.f32.mrb[0].mxu0
    %v385 = vadd.f32 0.0, %v384
    %v386 = vpop.f32.mrb[0].mxu0
    %387 = vmatprep.mubr.f32.mxu0 0.0
    %388 = vmatmul.mubr.f32.gmra.mrb[0].mxu0 %v271
    %v389 = vpop.f32.mrb[0].mxu0
    %v390 = vadd.f32 0.0, %v389
    %v391 = vpop.f32.mrb[0].mxu0
    %392 = vdwg.mxu0
    %v393 = vmul.f32 %v340, 0.35355338
    %v394 = vmul.f32 %v345, 0.35355338
    %v395 = vmul.f32 %v350, 0.35355338
    %v396 = vmul.f32 %v355, 0.35355338
    %v397 = vmul.f32 %v360, 0.35355338
    %v398 = vmul.f32 %v365, 0.35355338
    %v399 = vmul.f32 %v370, 0.35355338
    %v400 = vmul.f32 %v375, 0.35355338
    %v401 = vmul.f32 %v380, 0.35355338
    %v402 = vmul.f32 %v385, 0.35355338
    %v403 = vmul.f32 %v390, 0.35355338
    %v404 = vld [vmem:[%s4] sm:$0xff]
    %v405 = vld [vmem:[%s4 + $0x8] sm:$0xff]
    %v406 = vld [vmem:[%s4 + $0x10] sm:$0xff]
    %v407 = vld [vmem:[%s4 + $0x18] sm:$0xff]
    %v408 = vld [vmem:[%s4 + $0x20] sm:$0xff]
    %v409 = vld [vmem:[%s4 + $0x28] sm:$0xff]
    %v410 = vld [vmem:[%s4 + $0x30] sm:$0xff]
    %v411 = vld [vmem:[%s4 + $0x38] sm:$0xff]
    %412 = vmatprep.subr.mxu0 0.0
    %413 = vmatpush1.msra.mxu0 %v404
    %414 = vmatprep.subr.mxu0 0.0
    %415 = vmatpush1.msra.mxu0 %v405
    %416 = vmatprep.subr.mxu0 0.0
    %417 = vmatpush1.msra.mxu0 %v406
    %418 = vmatprep.subr.mxu0 0.0
    %419 = vmatpush1.msra.mxu0 %v407
    %420 = vmatprep.subr.mxu0 0.0
    %421 = vmatpush1.msra.mxu0 %v408
    %422 = vmatprep.subr.mxu0 0.0
    %423 = vmatpush1.msra.mxu0 %v409
    %424 = vmatprep.subr.mxu0 0.0
    %425 = vmatpush1.msra.mxu0 %v410
    %426 = vmatprep.subr.mxu0 0.0
    %427 = vmatpush1.msra.mxu0 %v411
    %428 = vmatprep.subr.mxu0 0.0
    %429 = vmatpush1.msra.mxu0 0.0
    %430 = vmatprep.subr.mxu0 0.0
    %431 = vmatpush1.msra.mxu0 0.0
    %432 = vmatprep.subr.mxu0 0.0
    %433 = vmatpush1.msra.mxu0 0.0
    %434 = vmatprep.subr.mxu0 0.0
    %435 = vmatpush1.msra.mxu0 0.0
    %436 = vmatprep.subr.mxu0 0.0
    %437 = vmatpush1.msra.mxu0 0.0
    %438 = vmatprep.subr.mxu0 0.0
    %439 = vmatpush1.msra.mxu0 0.0
    %440 = vmatprep.subr.mxu0 0.0
    %441 = vmatpush1.msra.mxu0 0.0
    %442 = vmatprep.subr.mxu0 0.0
    %443 = vmatpush1.msra.mxu0 0.0
    %444 = vmatprep.subr.mxu0 0.0
    %445 = vmatpush1.msra.mxu0 0.0
    %446 = vmatprep.subr.mxu0 0.0
    %447 = vmatpush1.msra.mxu0 0.0
    %448 = vmatprep.subr.mxu0 0.0
    %449 = vmatpush1.msra.mxu0 0.0
    %450 = vmatprep.subr.mxu0 0.0
    %451 = vmatpush1.msra.mxu0 0.0
    %452 = vmatprep.subr.mxu0 0.0
    %453 = vmatpush1.msra.mxu0 0.0
    %454 = vmatprep.subr.mxu0 0.0
    %455 = vmatpush1.msra.mxu0 0.0
    %456 = vmatprep.subr.mxu0 0.0
    %457 = vmatpush1.msra.mxu0 0.0
    %458 = vmatprep.subr.mxu0 0.0
    %459 = vmatpush1.msra.mxu0 0.0
    %460 = vmatprep.subr.mxu0 0.0
    %461 = vmatpush1.msra.mxu0 0.0
    %462 = vmatprep.subr.mxu0 0.0
    %463 = vmatpush1.msra.mxu0 0.0
    %464 = vmatprep.subr.mxu0 0.0
    %465 = vmatpush1.msra.mxu0 0.0
    %466 = vmatprep.subr.mxu0 0.0
    %467 = vmatpush1.msra.mxu0 0.0
    %468 = vmatprep.subr.mxu0 0.0
    %469 = vmatpush1.msra.mxu0 0.0
    %470 = vmatprep.subr.mxu0 0.0
    %471 = vmatpush1.msra.mxu0 0.0
    %472 = vmatprep.subr.mxu0 0.0
    %473 = vmatpush1.msra.mxu0 0.0
    %474 = vmatprep.subr.mxu0 0.0
    %475 = vmatpush1.msra.mxu0 0.0
    %476 = vmatprep.mubr.f32.mxu0 0.0
    %477 = vmatmul.mubr.f32.gmra.mrb[0].mxu0 %v241
    %v478 = vpop.f32.mrb[0].mxu0
    %v479 = vadd.f32 0.0, %v478
    %v480 = vpop.f32.mrb[0].mxu0
    %481 = vmatprep.mubr.f32.mxu0 0.0
    %482 = vmatmul.mubr.f32.gmra.mrb[0].mxu0 %v244
    %v483 = vpop.f32.mrb[0].mxu0
    %v484 = vadd.f32 0.0, %v483
    %v485 = vpop.f32.mrb[0].mxu0
    %486 = vmatprep.mubr.f32.mxu0 0.0
    %487 = vmatmul.mubr.f32.gmra.mrb[0].mxu0 %v247
    %v488 = vpop.f32.mrb[0].mxu0
    %v489 = vadd.f32 0.0, %v488
    %v490 = vpop.f32.mrb[0].mxu0
    %491 = vmatprep.mubr.f32.mxu0 0.0
    %492 = vmatmul.mubr.f32.gmra.mrb[0].mxu0 %v250
    %v493 = vpop.f32.mrb[0].mxu0
    %v494 = vadd.f32 0.0, %v493
    %v495 = vpop.f32.mrb[0].mxu0
    %496 = vmatprep.mubr.f32.mxu0 0.0
    %497 = vmatmul.mubr.f32.gmra.mrb[0].mxu0 %v253
    %v498 = vpop.f32.mrb[0].mxu0
    %v499 = vadd.f32 0.0, %v498
    %v500 = vpop.f32.mrb[0].mxu0
    %501 = vmatprep.mubr.f32.mxu0 0.0
    %502 = vmatmul.mubr.f32.gmra.mrb[0].mxu0 %v256
    %v503 = vpop.f32.mrb[0].mxu0
    %v504 = vadd.f32 0.0, %v503
    %v505 = vpop.f32.mrb[0].mxu0
    %506 = vmatprep.mubr.f32.mxu0 0.0
    %507 = vmatmul.mubr.f32.gmra.mrb[0].mxu0 %v259
    %v508 = vpop.f32.mrb[0].mxu0
    %v509 = vadd.f32 0.0, %v508
    %v510 = vpop.f32.mrb[0].mxu0
    %511 = vmatprep.mubr.f32.mxu0 0.0
    %512 = vmatmul.mubr.f32.gmra.mrb[0].mxu0 %v262
    %v513 = vpop.f32.mrb[0].mxu0
    %v514 = vadd.f32 0.0, %v513
    %v515 = vpop.f32.mrb[0].mxu0
    %516 = vmatprep.mubr.f32.mxu0 0.0
    %517 = vmatmul.mubr.f32.gmra.mrb[0].mxu0 %v265
    %v518 = vpop.f32.mrb[0].mxu0
    %v519 = vadd.f32 0.0, %v518
    %v520 = vpop.f32.mrb[0].mxu0
    %521 = vmatprep.mubr.f32.mxu0 0.0
    %522 = vmatmul.mubr.f32.gmra.mrb[0].mxu0 %v268
    %v523 = vpop.f32.mrb[0].mxu0
    %v524 = vadd.f32 0.0, %v523
    %v525 = vpop.f32.mrb[0].mxu0
    %526 = vmatprep.mubr.f32.mxu0 0.0
    %527 = vmatmul.mubr.f32.gmra.mrb[0].mxu0 %v271
    %v528 = vpop.f32.mrb[0].mxu0
    %v529 = vadd.f32 0.0, %v528
    %v530 = vpop.f32.mrb[0].mxu0
    %531 = vdwg.mxu0
    %v532 = vld [vmem:[#allocation2] sm:$0xff]
    %v533 = vld [vmem:[#allocation2 + $0x8] sm:$0xff]
    %v534 = vld [vmem:[#allocation2 + $0x10] sm:$0xff]
    %v535 = vld [vmem:[#allocation2 + $0x18] sm:$0xff]
    %v536 = vld [vmem:[#allocation2 + $0x20] sm:$0xff]
    %v537 = vld [vmem:[#allocation2 + $0x28] sm:$0xff]
    %v538 = vld [vmem:[#allocation2 + $0x30] sm:$0xff]
    %v539 = vld [vmem:[#allocation2 + $0x38] sm:$0xff]
    %540 = vmatprep.subr.mxu0 0.0
    %541 = vmatpush1.msra.mxu0 %v532
    %542 = vmatprep.subr.mxu0 0.0
    %543 = vmatpush1.msra.mxu0 %v533
    %544 = vmatprep.subr.mxu0 0.0
    %545 = vmatpush1.msra.mxu0 %v534
    %546 = vmatprep.subr.mxu0 0.0
    %547 = vmatpush1.msra.mxu0 %v535
    %548 = vmatprep.subr.mxu0 0.0
    %549 = vmatpush1.msra.mxu0 %v536
    %550 = vmatprep.subr.mxu0 0.0
    %551 = vmatpush1.msra.mxu0 %v537
    %552 = vmatprep.subr.mxu0 0.0
    %553 = vmatpush1.msra.mxu0 %v538
    %554 = vmatprep.subr.mxu0 0.0
    %555 = vmatpush1.msra.mxu0 %v539
    %556 = vmatprep.subr.mxu0 0.0
    %557 = vmatpush1.msra.mxu0 0.0
    %558 = vmatprep.subr.mxu0 0.0
    %559 = vmatpush1.msra.mxu0 0.0
    %560 = vmatprep.subr.mxu0 0.0
    %561 = vmatpush1.msra.mxu0 0.0
    %562 = vmatprep.subr.mxu0 0.0
    %563 = vmatpush1.msra.mxu0 0.0
    %564 = vmatprep.subr.mxu0 0.0
    %565 = vmatpush1.msra.mxu0 0.0
    %566 = vmatprep.subr.mxu0 0.0
    %567 = vmatpush1.msra.mxu0 0.0
    %568 = vmatprep.subr.mxu0 0.0
    %569 = vmatpush1.msra.mxu0 0.0
    %570 = vmatprep.subr.mxu0 0.0
    %571 = vmatpush1.msra.mxu0 0.0
    %572 = vmatprep.subr.mxu0 0.0
    %573 = vmatpush1.msra.mxu0 0.0
    %574 = vmatprep.subr.mxu0 0.0
    %575 = vmatpush1.msra.mxu0 0.0
    %576 = vmatprep.subr.mxu0 0.0
    %577 = vmatpush1.msra.mxu0 0.0
    %578 = vmatprep.subr.mxu0 0.0
    %579 = vmatpush1.msra.mxu0 0.0
    %580 = vmatprep.subr.mxu0 0.0
    %581 = vmatpush1.msra.mxu0 0.0
    %582 = vmatprep.subr.mxu0 0.0
    %583 = vmatpush1.msra.mxu0 0.0
    %584 = vmatprep.subr.mxu0 0.0
    %585 = vmatpush1.msra.mxu0 0.0
    %586 = vmatprep.subr.mxu0 0.0
    %587 = vmatpush1.msra.mxu0 0.0
    %588 = vmatprep.subr.mxu0 0.0
    %589 = vmatpush1.msra.mxu0 0.0
    %590 = vmatprep.subr.mxu0 0.0
    %591 = vmatpush1.msra.mxu0 0.0
    %592 = vmatprep.subr.mxu0 0.0
    %593 = vmatpush1.msra.mxu0 0.0
    %594 = vmatprep.subr.mxu0 0.0
    %595 = vmatpush1.msra.mxu0 0.0
    %596 = vmatprep.subr.mxu0 0.0
    %597 = vmatpush1.msra.mxu0 0.0
    %598 = vmatprep.subr.mxu0 0.0
    %599 = vmatpush1.msra.mxu0 0.0
    %600 = vmatprep.subr.mxu0 0.0
    %601 = vmatpush1.msra.mxu0 0.0
    %602 = vmatprep.subr.mxu0 0.0
    %603 = vmatpush1.msra.mxu0 0.0
    %604 = vmatprep.mubr.f32.mxu0 0.0
    %605 = vmatmul.mubr.f32.gmra.mrb[0].mxu0 %v241
    %v606 = vpop.f32.mrb[0].mxu0
    %v607 = vadd.f32 0.0, %v606
    %v608 = vpop.f32.mrb[0].mxu0
    %609 = vmatprep.mubr.f32.mxu0 0.0
    %610 = vmatmul.mubr.f32.gmra.mrb[0].mxu0 %v244
    %v611 = vpop.f32.mrb[0].mxu0
    %v612 = vadd.f32 0.0, %v611
    %v613 = vpop.f32.mrb[0].mxu0
    %614 = vmatprep.mubr.f32.mxu0 0.0
    %615 = vmatmul.mubr.f32.gmra.mrb[0].mxu0 %v247
    %v616 = vpop.f32.mrb[0].mxu0
    %v617 = vadd.f32 0.0, %v616
    %v618 = vpop.f32.mrb[0].mxu0
    %619 = vmatprep.mubr.f32.mxu0 0.0
    %620 = vmatmul.mubr.f32.gmra.mrb[0].mxu0 %v250
    %v621 = vpop.f32.mrb[0].mxu0
    %v622 = vadd.f32 0.0, %v621
    %v623 = vpop.f32.mrb[0].mxu0
    %624 = vmatprep.mubr.f32.mxu0 0.0
    %625 = vmatmul.mubr.f32.gmra.mrb[0].mxu0 %v253
    %v626 = vpop.f32.mrb[0].mxu0
    %v627 = vadd.f32 0.0, %v626
    %v628 = vpop.f32.mrb[0].mxu0
    %629 = vmatprep.mubr.f32.mxu0 0.0
    %630 = vmatmul.mubr.f32.gmra.mrb[0].mxu0 %v256
    %v631 = vpop.f32.mrb[0].mxu0
    %v632 = vadd.f32 0.0, %v631
    %v633 = vpop.f32.mrb[0].mxu0
    %634 = vmatprep.mubr.f32.mxu0 0.0
    %635 = vmatmul.mubr.f32.gmra.mrb[0].mxu0 %v259
    %v636 = vpop.f32.mrb[0].mxu0
    %v637 = vadd.f32 0.0, %v636
    %v638 = vpop.f32.mrb[0].mxu0
    %639 = vmatprep.mubr.f32.mxu0 0.0
    %640 = vmatmul.mubr.f32.gmra.mrb[0].mxu0 %v262
    %v641 = vpop.f32.mrb[0].mxu0
    %v642 = vadd.f32 0.0, %v641
    %v643 = vpop.f32.mrb[0].mxu0
    %644 = vmatprep.mubr.f32.mxu0 0.0
    %645 = vmatmul.mubr.f32.gmra.mrb[0].mxu0 %v265
    %v646 = vpop.f32.mrb[0].mxu0
    %v647 = vadd.f32 0.0, %v646
    %v648 = vpop.f32.mrb[0].mxu0
    %649 = vmatprep.mubr.f32.mxu0 0.0
    %650 = vmatmul.mubr.f32.gmra.mrb[0].mxu0 %v268
    %v651 = vpop.f32.mrb[0].mxu0
    %v652 = vadd.f32 0.0, %v651
    %v653 = vpop.f32.mrb[0].mxu0
    %654 = vmatprep.mubr.f32.mxu0 0.0
    %655 = vmatmul.mubr.f32.gmra.mrb[0].mxu0 %v271
    %v656 = vpop.f32.mrb[0].mxu0
    %v657 = vadd.f32 0.0, %v656
    %v658 = vpop.f32.mrb[0].mxu0
    %659 = vdwg.mxu0
    %660 = vst.msk [vmem:[%s6] sm:$0xff] %vm51, %v393
    %661 = vst.msk [vmem:[%s6 + $0x8] sm:$0xff] %vm51, %v394
    %662 = vst.msk [vmem:[%s6 + $0x10] sm:$0xff] %vm51, %v395
    %663 = vst.msk [vmem:[%s6 + $0x18] sm:$0xff] %vm51, %v396
    %664 = vst.msk [vmem:[%s6 + $0x20] sm:$0xff] %vm51, %v397
    %665 = vst.msk [vmem:[%s6 + $0x28] sm:$0xff] %vm51, %v398
    %666 = vst.msk [vmem:[%s6 + $0x30] sm:$0xff] %vm51, %v399
    %667 = vst.msk [vmem:[%s6 + $0x38] sm:$0xff] %vm51, %v400
    %668 = vst.msk [vmem:[%s6 + $0x40] sm:$0xff] %vm51, %v401
    %669 = vst.msk [vmem:[%s6 + $0x48] sm:$0xff] %vm51, %v402
    %670 = vst.msk [vmem:[%s6 + $0x50] sm:$0xff] %vm51, %v403
    %671 = vst.msk [vmem:[%s7] sm:$0xff] %vm51, %v479
    %672 = vst.msk [vmem:[%s7 + $0x8] sm:$0xff] %vm51, %v484
    %673 = vst.msk [vmem:[%s7 + $0x10] sm:$0xff] %vm51, %v489
    %674 = vst.msk [vmem:[%s7 + $0x18] sm:$0xff] %vm51, %v494
    %675 = vst.msk [vmem:[%s7 + $0x20] sm:$0xff] %vm51, %v499
    %676 = vst.msk [vmem:[%s7 + $0x28] sm:$0xff] %vm51, %v504
    %677 = vst.msk [vmem:[%s7 + $0x30] sm:$0xff] %vm51, %v509
    %678 = vst.msk [vmem:[%s7 + $0x38] sm:$0xff] %vm51, %v514
    %679 = vst.msk [vmem:[%s7 + $0x40] sm:$0xff] %vm51, %v519
    %680 = vst.msk [vmem:[%s7 + $0x48] sm:$0xff] %vm51, %v524
    %681 = vst.msk [vmem:[%s7 + $0x50] sm:$0xff] %vm51, %v529
    %682 = vst.msk [vmem:[%s8] sm:$0xff] %vm51, %v607
    %683 = vst.msk [vmem:[%s8 + $0x8] sm:$0xff] %vm51, %v612
    %684 = vst.msk [vmem:[%s8 + $0x10] sm:$0xff] %vm51, %v617
    %685 = vst.msk [vmem:[%s8 + $0x18] sm:$0xff] %vm51, %v622
    %686 = vst.msk [vmem:[%s8 + $0x20] sm:$0xff] %vm51, %v627
    %687 = vst.msk [vmem:[%s8 + $0x28] sm:$0xff] %vm51, %v632
    %688 = vst.msk [vmem:[%s8 + $0x30] sm:$0xff] %vm51, %v637
    %689 = vst.msk [vmem:[%s8 + $0x38] sm:$0xff] %vm51, %v642
    %690 = vst.msk [vmem:[%s8 + $0x40] sm:$0xff] %vm51, %v647
    %691 = vst.msk [vmem:[%s8 + $0x48] sm:$0xff] %vm51, %v652
    %692 = vst.msk [vmem:[%s8 + $0x50] sm:$0xff] %vm51, %v657
    // Predicated region
    $region30: #{tpu_custom_call.1} parent=1 // pred_check
      _
    $region31: #{tpu_custom_call.1} parent=1 // pred_check_branch
      %694 = sbr.rel (0) target = $region33
    $region32: #{tpu_custom_call.1} parent=1 // pred_region
      _
    $region33: #{tpu_custom_call.1} parent=1 // pred_fallthru
      _
    // Predicated region
    $region34: #{tpu_custom_call.1} parent=1 // pred_check
      _
    $region35: #{tpu_custom_call.1} parent=1 // pred_check_branch
      %696 = sbr.rel (0) target = $region37
    $region36: #{tpu_custom_call.1} parent=1 // pred_region
      _
    $region37: #{tpu_custom_call.1} parent=1 // pred_fallthru
      _
    // Predicated region
    $region38: #{tpu_custom_call.1} parent=1 // pred_check
      _
    $region39: #{tpu_custom_call.1} parent=1 // pred_check_branch
      %698 = sbr.rel (0) target = $region41
    $region40: #{tpu_custom_call.1} parent=1 // pred_region
      _
    $region41: #{tpu_custom_call.1} parent=1 // pred_fallthru
      _
    // Predicated region
    $region42: #{tpu_custom_call.1} parent=1 // pred_check
      _
    $region43: #{tpu_custom_call.1} parent=1 // pred_check_branch
      %700 = sbr.rel (0) target = $region45
    $region44: #{tpu_custom_call.1} parent=1 // pred_region
      _
    $region45: #{tpu_custom_call.1} parent=1 // pred_fallthru
      _
    // Predicated region
    $region46: #{tpu_custom_call.1} parent=1 // pred_check
      _
    $region47: #{tpu_custom_call.1} parent=1 // pred_check_branch
      %702 = sbr.rel (0) target = $region49
    $region48: #{tpu_custom_call.1} parent=1 // pred_region
      _
    $region49: #{tpu_custom_call.1} parent=1 // pred_fallthru
      _
    // Predicated region
    $region50: #{tpu_custom_call.1} parent=1 // pred_check
      _
    $region51: #{tpu_custom_call.1} parent=1 // pred_check_branch
      %704 = sbr.rel (0) target = $region53
    $region52: #{tpu_custom_call.1} parent=1 // pred_region
      _
    $region53: #{tpu_custom_call.1} parent=1 // pred_fallthru
      _
    %705 = vsyncpa [#allocation3], 1

</llo_original>
